<compile_context>
chip_gen: v6e
topology: v6e:2x2x1
jax: 0.10.0
libtpu: 0.0.40
codegen_flags: <defaults>
</compile_context>

<pallas_src>
import functools
import math

import jax
import jax.numpy as jnp
import numpy as np
from jax.experimental import pallas as pl
from jax.experimental.pallas import tpu as pltpu


def _mha_kernel(x_ref, wqkv_ref, wo_ref, bqkv_ref, bo_ref, o_ref, acc_ref,
                *, head_dim):
    # Grid: (batch, head).  Head axis (trailing, "arbitrary") accumulates the
    # output projection into acc_ref; the output block index is constant in h.
    h = pl.program_id(1)

    @pl.when(h == 0)
    def _():
        acc_ref[...] = jnp.zeros_like(acc_ref)

    x = x_ref[0]          # (S, H)      bf16
    w = wqkv_ref[0]       # (H, 3*hd)   bf16, this head's [wq|wk|wv] slab
    wo_h = wo_ref[0]      # (hd, H)     bf16, this head's output-projection rows

    # Fused per-head q/k/v projection: one MXU matmul, f32 accumulation.
    # 1/sqrt(head_dim) is already folded into the wq/bq third (host-side).
    qkv = jnp.dot(x, w, preferred_element_type=jnp.float32) + bqkv_ref[0]  # (S, 3hd) f32
    q = qkv[:, 0 * head_dim:1 * head_dim]      # (S, hd) f32
    k = qkv[:, 1 * head_dim:2 * head_dim]      # (S, hd)
    v = qkv[:, 2 * head_dim:3 * head_dim]      # (S, hd)

    # scores[q, k] = <q[q, :], k[k, :]>  (contraction on hd, no transpose),
    # bf16 MXU operands, f32 result.
    s = jax.lax.dot_general(
        q.astype(jnp.bfloat16), k.astype(jnp.bfloat16),
        (((1,), (1,)), ((), ())),
        preferred_element_type=jnp.float32)    # (S, S) f32

    # Numerically-stable softmax in f32; approx reciprocal uses the EUP slot.
    m = jnp.max(s, axis=-1, keepdims=True)     # (S, 1)
    p = jnp.exp(s - m)                         # (S, S)
    l = jnp.sum(p, axis=-1, keepdims=True)     # (S, 1)
    p = p * pl.reciprocal(l, approx=True)

    # Attention-weighted values: bf16 operands, f32 accumulation.
    ctx = jnp.dot(p.astype(jnp.bfloat16), v.astype(jnp.bfloat16),
                  preferred_element_type=jnp.float32)          # (S, hd) f32

    # This head's contribution to the output projection, accumulated into the
    # resident (S, H) f32 scratch (replaces concatenate + full (H, H) matmul).
    acc_ref[...] += jnp.dot(ctx.astype(jnp.bfloat16), wo_h,
                            preferred_element_type=jnp.float32)

    @pl.when(h == pl.num_programs(1) - 1)
    def _():
        o_ref[0] = (acc_ref[...] + bo_ref[...]).astype(o_ref.dtype)


def multi_head_attention(x, params, *, num_heads):
    """x: (B, S, H) float32. params: dict of (H, H) weights and (1, H) biases."""
    B, S, H = x.shape
    hd = H // num_heads
    scale = 1.0 / math.sqrt(hd)

    # Fold the attention scale into the query projection (weight loaded once,
    # deletes a per-step VPU multiply).
    wq = params["wq"] * scale
    bq = params["bq"] * scale

    # Per-head weight stacking: each grid step streams one (H, 3*hd) slab
    # [wq_h | wk_h | wv_h] and the matching (hd, H) rows of wo.
    def split_cols(w):                      # (H, H) -> (nh, H, hd)
        return w.reshape(H, num_heads, hd).transpose(1, 0, 2)

    def split_bias(b):                      # (1, H) -> (nh, 1, hd)
        return b.reshape(1, num_heads, hd).transpose(1, 0, 2)

    wqkv_heads = jnp.concatenate(
        [split_cols(wq), split_cols(params["wk"]), split_cols(params["wv"])],
        axis=-1)                                               # (nh, H, 3hd)
    bqkv_heads = jnp.concatenate(
        [split_bias(bq), split_bias(params["bk"]), split_bias(params["bv"])],
        axis=-1)                                               # (nh, 1, 3hd)
    wo_heads = params["wo"].reshape(num_heads, hd, H)          # (nh, hd, H)

    # bf16 MXU operands (host-side cast halves DMA bytes); biases stay f32
    # because they are added to f32 accumulations.
    x_bf16 = x.astype(jnp.bfloat16)
    wqkv_heads = wqkv_heads.astype(jnp.bfloat16)
    wo_heads = wo_heads.astype(jnp.bfloat16)
    bqkv_heads = bqkv_heads.astype(jnp.float32)
    bo = params["bo"].astype(jnp.float32)

    # Chip-aware VMEM budget: ~80% of physical (v5e/v6e: 128 MiB, v7x: 64 MiB).
    try:
        vmem_cap = getattr(pltpu.get_tpu_info(), "vmem_capacity_bytes",
                           128 * 1024 * 1024)
    except Exception:
        vmem_cap = 128 * 1024 * 1024
    vmem_limit = max(int(0.8 * vmem_cap), 32 * 1024 * 1024)

    kernel = functools.partial(_mha_kernel, head_dim=hd)

    return pl.pallas_call(
        kernel,
        out_shape=jax.ShapeDtypeStruct((B, S, H), x.dtype),
        grid_spec=pltpu.PrefetchScalarGridSpec(
            num_scalar_prefetch=0,
            grid=(B, num_heads),
            in_specs=[
                pl.BlockSpec((1, S, H), lambda b, h: (b, 0, 0)),        # x (resident over heads)
                pl.BlockSpec((1, H, 3 * hd), lambda b, h: (h, 0, 0)),   # per-head [wq|wk|wv]
                pl.BlockSpec((1, hd, H), lambda b, h: (h, 0, 0)),       # per-head wo rows
                pl.BlockSpec((1, 1, 3 * hd), lambda b, h: (h, 0, 0)),   # per-head biases
                pl.BlockSpec((1, H), lambda b, h: (0, 0)),              # bo (constant)
            ],
            out_specs=pl.BlockSpec((1, S, H), lambda b, h: (b, 0, 0)),
            scratch_shapes=[pltpu.VMEM((S, H), jnp.float32)],           # output-proj accumulator
        ),
        compiler_params=pltpu.CompilerParams(
            dimension_semantics=("parallel", "arbitrary"),   # batch sharded across TCs,
            vmem_limit_bytes=vmem_limit,                     # head axis is the reduction
        ),
    )(x_bf16, wqkv_heads, wo_heads, bqkv_heads, bo)


def _reference(x, params, *, num_heads):
    """Pure-JAX replica of the PyTorch forward (for validation)."""
    B, S, H = x.shape
    hd = H // num_heads
    q = x @ params["wq"] + params["bq"]
    k = x @ params["wk"] + params["bk"]
    v = x @ params["wv"] + params["bv"]
    q = q.reshape(B, S, num_heads, hd).transpose(0, 2, 1, 3)
    k = k.reshape(B, S, num_heads, hd).transpose(0, 2, 1, 3)
    v = v.reshape(B, S, num_heads, hd).transpose(0, 2, 1, 3)
    scores = jnp.einsum('bhqd,bhkd->bhqk', q, k) / math.sqrt(hd)
    attn = jax.nn.softmax(scores, axis=-1)
    out = jnp.einsum('bhqk,bhkd->bhqd', attn, v)
    out = out.transpose(0, 2, 1, 3).reshape(B, S, H)
    return out @ params["wo"] + params["bo"]


def _init_params(key, hidden_dim):
    """Deterministic init mimicking nn.Linear's U(-1/sqrt(fan_in), 1/sqrt(fan_in))."""
    bound = 1.0 / math.sqrt(hidden_dim)
    keys = jax.random.split(key, 8)

    def u(k, shape):
        return jax.random.uniform(k, shape, jnp.float32, -bound, bound)

    return {
        "wq": u(keys[0], (hidden_dim, hidden_dim)),
        "wk": u(keys[1], (hidden_dim, hidden_dim)),
        "wv": u(keys[2], (hidden_dim, hidden_dim)),
        "wo": u(keys[3], (hidden_dim, hidden_dim)),
        "bq": u(keys[4], (1, hidden_dim)),
        "bk": u(keys[5], (1, hidden_dim)),
        "bv": u(keys[6], (1, hidden_dim)),
        "bo": u(keys[7], (1, hidden_dim)),
    }


if __name__ == "__main__":
    B, S, H = 2, 8, 32
    NUM_HEADS = 8

    key = jax.random.PRNGKey(0)
    kx, kp = jax.random.split(key)
    x = jax.random.normal(kx, (B, S, H), jnp.float32)
    params = _init_params(kp, H)

    out = jax.block_until_ready(multi_head_attention(x, params, num_heads=NUM_HEADS))
    ref = jax.block_until_ready(_reference(x, params, num_heads=NUM_HEADS))

    # Tolerance loosened for bf16 MXU operands + approx softmax reciprocal.
    np.testing.assert_allclose(np.asarray(out), np.asarray(ref),
                               rtol=2e-2, atol=2e-2)

    print("KERNEL_OK")
</pallas_src>

<mosaic_0001>
module attributes {stable_mosaic.version = 11 : i64} {
  func.func @_mha_kernel(%arg0: i32, %arg1: i32, %arg2: memref<1x8x32xbf16, #tpu.memory_space<vmem>>, %arg3: memref<1x32x12xbf16, #tpu.memory_space<vmem>>, %arg4: memref<1x4x32xbf16, #tpu.memory_space<vmem>>, %arg5: memref<1x1x12xf32, #tpu.memory_space<vmem>>, %arg6: memref<1x32xf32, #tpu.memory_space<vmem>>, %arg7: memref<1x8x32xf32, #tpu.memory_space<vmem>>, %arg8: memref<8x32xf32, #tpu.memory_space<vmem>>) attributes {dimension_semantics = [#tpu.dimension_semantics<parallel>, #tpu.dimension_semantics<arbitrary>], iteration_bounds = array<i64: 2, 8>, scalar_prefetch = 0 : i64, scratch_operands = 1 : i64, tpu.core_type = #tpu.core_type<tc>, window_params = [{transform_indices = @transform_0, window_bounds = array<i64: 1, 8, 32>}, {transform_indices = @transform_1, window_bounds = array<i64: 1, 32, 12>}, {transform_indices = @transform_2, window_bounds = array<i64: 1, 4, 32>}, {transform_indices = @transform_3, window_bounds = array<i64: 1, 1, 12>}, {pipeline_mode = #tpu.pipeline_mode<synchronous>, transform_indices = @transform_4, window_bounds = array<i64: 1, 32>}, {transform_indices = @transform_5, window_bounds = array<i64: 1, 8, 32>}]} {
    %c0_i32 = arith.constant 0 : i32
    %0 = arith.cmpi eq, %arg1, %c0_i32 : i32
    %1 = arith.extui %0 : i1 to i32
    %c0_i32_0 = arith.constant 0 : i32
    %2 = arith.cmpi ne, %1, %c0_i32_0 : i32
    scf.if %2 {
      %cst_22 = arith.constant 0.000000e+00 : f32
      %41 = vector.broadcast %cst_22 : f32 to vector<8x32xf32>
      %c0_23 = arith.constant 0 : index
      %c0_24 = arith.constant 0 : index
      %42 = vector.load %arg8[%c0_23, %c0_24] : memref<8x32xf32, #tpu.memory_space<vmem>>, vector<8x32xf32>
      tpu.vector_store %arg8[%c0_23, %c0_24], %41 {strides = array<i32>} : memref<8x32xf32, #tpu.memory_space<vmem>>, vector<8x32xf32>,
    } else {
    }
    %c0 = arith.constant 0 : index
    %c0_1 = arith.constant 0 : index
    %c0_2 = arith.constant 0 : index
    %3 = vector.load %arg2[%c0, %c0_1, %c0_2] : memref<1x8x32xbf16, #tpu.memory_space<vmem>>, vector<1x8x32xbf16>
    %4 = vector.shape_cast %3 : vector<1x8x32xbf16> to vector<8x32xbf16>
    %c0_3 = arith.constant 0 : index
    %c0_4 = arith.constant 0 : index
    %c0_5 = arith.constant 0 : index
    %5 = vector.load %arg3[%c0_3, %c0_4, %c0_5] : memref<1x32x12xbf16, #tpu.memory_space<vmem>>, vector<1x32x12xbf16>
    %6 = vector.shape_cast %5 : vector<1x32x12xbf16> to vector<32x12xbf16>
    %c0_6 = arith.constant 0 : index
    %c0_7 = arith.constant 0 : index
    %c0_8 = arith.constant 0 : index
    %7 = vector.load %arg4[%c0_6, %c0_7, %c0_8] : memref<1x4x32xbf16, #tpu.memory_space<vmem>>, vector<1x4x32xbf16>
    %8 = vector.shape_cast %7 : vector<1x4x32xbf16> to vector<4x32xbf16>
    %cst = arith.constant dense<0.000000e+00> : vector<8x12xf32>
    %9 = tpu.matmul %4, %6, %cst {dimension_numbers = #tpu.dot_dimension_numbers<[1], [0], [0], [1], [0, 0, 1, 1], [], []>} : vector<8x32xbf16>, vector<32x12xbf16>, vector<8x12xf32> -> vector<8x12xf32>
    %c0_9 = arith.constant 0 : index
    %c0_10 = arith.constant 0 : index
    %c0_11 = arith.constant 0 : index
    %10 = vector.load %arg5[%c0_9, %c0_10, %c0_11] : memref<1x1x12xf32, #tpu.memory_space<vmem>>, vector<1x1x12xf32>
    %11 = vector.shape_cast %10 : vector<1x1x12xf32> to vector<1x12xf32>
    %12 = vector.broadcast %11 : vector<1x12xf32> to vector<8x12xf32>
    %13 = arith.addf %9, %12 : vector<8x12xf32>
    %14 = vector.extract_strided_slice %13 {offsets = [0, 0], sizes = [8, 4], strides = [1, 1]} : vector<8x12xf32> to vector<8x4xf32>
    %15 = vector.extract_strided_slice %13 {offsets = [0, 4], sizes = [8, 4], strides = [1, 1]} : vector<8x12xf32> to vector<8x4xf32>
    %16 = vector.extract_strided_slice %13 {offsets = [0, 8], sizes = [8, 4], strides = [1, 1]} : vector<8x12xf32> to vector<8x4xf32>
    %17 = arith.truncf %14 : vector<8x4xf32> to vector<8x4xbf16>
    %18 = arith.truncf %15 : vector<8x4xf32> to vector<8x4xbf16>
    %cst_12 = arith.constant dense<0.000000e+00> : vector<8x8xf32>
    %19 = tpu.matmul %17, %18, %cst_12 {dimension_numbers = #tpu.dot_dimension_numbers<[1], [1], [0], [0], [0, 0, 1, 0], [], []>} : vector<8x4xbf16>, vector<8x4xbf16>, vector<8x8xf32> -> vector<8x8xf32>
    %cst_13 = arith.constant dense<0xFF800000> : vector<8xf32>
    %20 = vector.multi_reduction <maximumf>, %19, %cst_13 [1] : vector<8x8xf32> to vector<8xf32>
    %21 = vector.shape_cast %20 : vector<8xf32> to vector<8x1xf32>
    %22 = vector.broadcast %21 : vector<8x1xf32> to vector<8x8xf32>
    %23 = arith.subf %19, %22 : vector<8x8xf32>
    %24 = math.exp %23 : vector<8x8xf32>
    %cst_14 = arith.constant dense<0.000000e+00> : vector<8xf32>
    %25 = vector.multi_reduction <add>, %24, %cst_14 [1] : vector<8x8xf32> to vector<8xf32>
    %26 = vector.shape_cast %25 : vector<8xf32> to vector<8x1xf32>
    %27 = tpu.reciprocal %26 {approx = true} : vector<8x1xf32> -> vector<8x1xf32>
    %28 = vector.broadcast %27 : vector<8x1xf32> to vector<8x8xf32>
    %29 = arith.mulf %24, %28 : vector<8x8xf32>
    %30 = arith.truncf %29 : vector<8x8xf32> to vector<8x8xbf16>
    %31 = arith.truncf %16 : vector<8x4xf32> to vector<8x4xbf16>
    %cst_15 = arith.constant dense<0.000000e+00> : vector<8x4xf32>
    %32 = tpu.matmul %30, %31, %cst_15 {dimension_numbers = #tpu.dot_dimension_numbers<[1], [0], [0], [1], [0, 0, 1, 1], [], []>} : vector<8x8xbf16>, vector<8x4xbf16>, vector<8x4xf32> -> vector<8x4xf32>
    %c0_16 = arith.constant 0 : index
    %c0_17 = arith.constant 0 : index
    %33 = vector.load %arg8[%c0_16, %c0_17] : memref<8x32xf32, #tpu.memory_space<vmem>>, vector<8x32xf32>
    %34 = arith.truncf %32 : vector<8x4xf32> to vector<8x4xbf16>
    %cst_18 = arith.constant dense<0.000000e+00> : vector<8x32xf32>
    %35 = tpu.matmul %34, %8, %cst_18 {dimension_numbers = #tpu.dot_dimension_numbers<[1], [0], [0], [1], [0, 0, 1, 1], [], []>} : vector<8x4xbf16>, vector<4x32xbf16>, vector<8x32xf32> -> vector<8x32xf32>
    %36 = arith.addf %33, %35 : vector<8x32xf32>
    %c0_19 = arith.constant 0 : index
    %c0_20 = arith.constant 0 : index
    %37 = vector.load %arg8[%c0_19, %c0_20] : memref<8x32xf32, #tpu.memory_space<vmem>>, vector<8x32xf32>
    tpu.vector_store %arg8[%c0_19, %c0_20], %36 {strides = array<i32>} : memref<8x32xf32, #tpu.memory_space<vmem>>, vector<8x32xf32>,
    %c7_i32 = arith.constant 7 : i32
    %38 = arith.cmpi eq, %arg1, %c7_i32 : i32
    %39 = arith.extui %38 : i1 to i32
    %c0_i32_21 = arith.constant 0 : i32
    %40 = arith.cmpi ne, %39, %c0_i32_21 : i32
    scf.if %40 {
      %c0_22 = arith.constant 0 : index
      %c0_23 = arith.constant 0 : index
      %41 = vector.load %arg8[%c0_22, %c0_23] : memref<8x32xf32, #tpu.memory_space<vmem>>, vector<8x32xf32>
      %c0_24 = arith.constant 0 : index
      %c0_25 = arith.constant 0 : index
      %42 = vector.load %arg6[%c0_24, %c0_25] : memref<1x32xf32, #tpu.memory_space<vmem>>, vector<1x32xf32>
      %43 = vector.broadcast %42 : vector<1x32xf32> to vector<8x32xf32>
      %44 = arith.addf %41, %43 : vector<8x32xf32>
      %c0_26 = arith.constant 0 : index
      %c0_27 = arith.constant 0 : index
      %c0_28 = arith.constant 0 : index
      %45 = vector.load %arg7[%c0_26, %c0_27, %c0_28] : memref<1x8x32xf32, #tpu.memory_space<vmem>>, vector<1x8x32xf32>
      %46 = vector.shape_cast %45 : vector<1x8x32xf32> to vector<8x32xf32>
      %47 = vector.shape_cast %44 : vector<8x32xf32> to vector<1x8x32xf32>
      tpu.vector_store %arg7[%c0_26, %c0_27, %c0_28], %47 {strides = array<i32>} : memref<1x8x32xf32, #tpu.memory_space<vmem>>, vector<1x8x32xf32>,
    } else {
    }
    return
  }
  func.func @transform_0(%arg0: i32, %arg1: i32) -> (i32, i32, i32) {
    %c0_i32 = arith.constant 0 : i32
    %c0_i32_0 = arith.constant 0 : i32
    %c0_i32_1 = arith.constant 0 : i32
    return %arg0, %c0_i32, %c0_i32_0 : i32, i32, i32
  }
  func.func @transform_1(%arg0: i32, %arg1: i32) -> (i32, i32, i32) {
    %c0_i32 = arith.constant 0 : i32
    %c0_i32_0 = arith.constant 0 : i32
    %c0_i32_1 = arith.constant 0 : i32
    return %arg1, %c0_i32, %c0_i32_0 : i32, i32, i32
  }
  func.func @transform_2(%arg0: i32, %arg1: i32) -> (i32, i32, i32) {
    %c0_i32 = arith.constant 0 : i32
    %c0_i32_0 = arith.constant 0 : i32
    %c0_i32_1 = arith.constant 0 : i32
    return %arg1, %c0_i32, %c0_i32_0 : i32, i32, i32
  }
  func.func @transform_3(%arg0: i32, %arg1: i32) -> (i32, i32, i32) {
    %c0_i32 = arith.constant 0 : i32
    %c0_i32_0 = arith.constant 0 : i32
    %c0_i32_1 = arith.constant 0 : i32
    return %arg1, %c0_i32, %c0_i32_0 : i32, i32, i32
  }
  func.func @transform_4(%arg0: i32, %arg1: i32) -> (i32, i32) {
    %c0_i32 = arith.constant 0 : i32
    %c0_i32_0 = arith.constant 0 : i32
    %c0_i32_1 = arith.constant 0 : i32
    return %c0_i32, %c0_i32_0 : i32, i32
  }
  func.func @transform_5(%arg0: i32, %arg1: i32) -> (i32, i32, i32) {
    %c0_i32 = arith.constant 0 : i32
    %c0_i32_0 = arith.constant 0 : i32
    %c0_i32_1 = arith.constant 0 : i32
    return %arg0, %c0_i32, %c0_i32_0 : i32, i32, i32
  }
}

</mosaic_0001>

<llo_original>
// kernel: tpu_custom_call.1
$region0: #{tpu_custom_call.1}
  #allocation0 [shape = 'u32[]', space=smem, size = 0x4, offset = 0x4, fixed_abs, tag = 'smem constant byte address 0x4 - core index']
  #allocation1 [shape = 'u32[144,128]{1,0:T(1,128)}', space=vmem, size = 0x12000, scoped, tag = 'internal scratch']
  #allocation2 [shape = 'f32[8,32]{1,0:T(8,128)}', space=vmem, size = 0x1000, scoped, tag = 'scratch operand']
  %s0 = inlined_call_operand.vmem [shape: bf16[2,8,32], index: 0, kind: input, shape index: {}]
  %s1 = inlined_call_operand.vmem [shape: bf16[8,32,12], index: 1, kind: input, shape index: {}]
  %s2 = inlined_call_operand.vmem [shape: bf16[8,4,32], index: 2, kind: input, shape index: {}]
  %s3 = inlined_call_operand.vmem [shape: f32[8,1,12], index: 3, kind: input, shape index: {}]
  %s4 = inlined_call_operand.vmem [shape: f32[1,32], index: 4, kind: input, shape index: {}]
  %s5 = inlined_call_operand.hbm [shape: f32[2,8,32], index: 5, kind: output, shape index: {}]
  %s6 = sld [smem:[#allocation0]]
  $region61: #{tpu_custom_call.1} parent=0
    _
  %s8 = ssub.s32 1, %s6
  %s9 = scalar_select 0, %s8, %s6
  $region1: #{tpu_custom_call.1} parent=0
    #allocation3 [shape = 'u8[8192]{0}', space=vmem, size = 0x2000, scoped, tag = 'output window, operand 0']
    #allocation4 [shape = 's32[2]{0}', space=sflag, size = 0x8, scoped, tag = 'scoped memory for tpu_custom_call.1']
    %10 = vsyncpa [#allocation4], 0
    %s11 = scalar_lea.sflag [#allocation4], 1
    %12 = vsyncpa %s11, 0
    loop: start=0, step=1, limit=18
    $region2: #{tpu_custom_call.1} parent=1 // loop_pre_header
      _
    $region3: #{tpu_custom_call.1} parent=1 // loop_header
      %s14 = sphi 0, %s18
      %p15 = scmp.ge.s32.totalorder %s14, 18
      %s21 = sphi 0, %s33
      %s22 = sphi 0, %s29
      %s23 = sphi 0, %s21
      %s24 = sphi 0, %s22
      %s25 = sphi 0, %s23
      %s26 = sphi 0, %s24
      %s36 = sphi 0, %s38
      %s39 = sphi 0, %s36
      %s40 = sphi 0, %s39
      %s56 = sphi 0, %s40
      %s62 = sphi 0, %s64
      %s65 = sphi 0, %s62
      %s66 = sphi 0, %s65
      %s82 = sphi 0, %s66
      %s88 = sphi 0, %s90
      %s91 = sphi 0, %s88
      %s92 = sphi 0, %s91
      %s108 = sphi 0, %s92
      %s114 = sphi 0, %s116
      %s117 = sphi 0, %s114
      %s118 = sphi 0, %s117
      %s134 = sphi 0, %s118
      %s138 = sphi 0, %s138
      %s140 = sphi 0, %s138
      %s141 = sphi 0, %s140
      %s155 = sphi 0, %s141
      %s161 = sphi 0, %s163
      %s164 = sphi 0, %s161
      %s165 = sphi 0, %s164
      %s181 = sphi 0, %s165
    $region4: #{tpu_custom_call.1} parent=1 // loop_header_branch
      %17 = sbr.rel (%p15) target = $region8
    $region5: #{tpu_custom_call.1} parent=1 // loop_body
      %s19 = ssub.s32 %s14, 1
      %s20 = ssub.s32 %s14, 2
      %s27 = sadd.s32 1, %s22
      %p28 = scmp.ge.s32.totalorder %s27, 8
      %s29 = scalar_select %p28, 0, %s27
      %s30 = sadd.s32 1, %s21
      %s31 = scalar_select %p28, %s30, %s21
      %p32 = scmp.ge.s32.totalorder %s31, 2
      %s33 = scalar_select %p32, 0, %s31
      %s34 = ssub.s32 %s21, %s33
      %p35 = scmp.eq.s32.totalorder %s34, 0
      %s37 = sadd.s32 %s36, 1
      %s38 = scalar_select %p35, %s36, %s37
      %p41 = pneg %p35
      %p42 = scmp.eq.s32.totalorder %s14, 15
      %p43 = por %p41, %p42
      %p44 = scmp.ne.s32.totalorder %s36, %s39
      %p45 = scmp.eq.s32.totalorder %s14, 0
      %p46 = por %p44, %p45
      %p47 = scmp.ne.s32.totalorder %s36, %s39
      %p48 = scmp.eq.s32.totalorder %s19, 15
      %p49 = por %p47, %p48
      %p50 = scmp.ne.s32.totalorder %s39, %s40
      %p51 = scmp.eq.s32.totalorder %s19, 0
      %p52 = por %p50, %p51
      %p53 = scmp.ne.s32.totalorder %s39, %s40
      %p54 = scmp.eq.s32.totalorder %s20, 15
      %p55 = por %p53, %p54
      %p57 = scmp.ne.s32.totalorder %s40, %s56
      %p58 = scmp.eq.s32.totalorder %s20, 0
      %p59 = por %p57, %p58
      %s60 = ssub.s32 %s22, %s29
      %p61 = scmp.eq.s32.totalorder %s60, 0
      %s63 = sadd.s32 %s62, 1
      %s64 = scalar_select %p61, %s62, %s63
      %p67 = pneg %p61
      %p68 = scmp.eq.s32.totalorder %s14, 15
      %p69 = por %p67, %p68
      %p70 = scmp.ne.s32.totalorder %s62, %s65
      %p71 = scmp.eq.s32.totalorder %s14, 0
      %p72 = por %p70, %p71
      %p73 = scmp.ne.s32.totalorder %s62, %s65
      %p74 = scmp.eq.s32.totalorder %s19, 15
      %p75 = por %p73, %p74
      %p76 = scmp.ne.s32.totalorder %s65, %s66
      %p77 = scmp.eq.s32.totalorder %s19, 0
      %p78 = por %p76, %p77
      %p79 = scmp.ne.s32.totalorder %s65, %s66
      %p80 = scmp.eq.s32.totalorder %s20, 15
      %p81 = por %p79, %p80
      %p83 = scmp.ne.s32.totalorder %s66, %s82
      %p84 = scmp.eq.s32.totalorder %s20, 0
      %p85 = por %p83, %p84
      %s86 = ssub.s32 %s22, %s29
      %p87 = scmp.eq.s32.totalorder %s86, 0
      %s89 = sadd.s32 %s88, 1
      %s90 = scalar_select %p87, %s88, %s89
      %p93 = pneg %p87
      %p94 = scmp.eq.s32.totalorder %s14, 15
      %p95 = por %p93, %p94
      %p96 = scmp.ne.s32.totalorder %s88, %s91
      %p97 = scmp.eq.s32.totalorder %s14, 0
      %p98 = por %p96, %p97
      %p99 = scmp.ne.s32.totalorder %s88, %s91
      %p100 = scmp.eq.s32.totalorder %s19, 15
      %p101 = por %p99, %p100
      %p102 = scmp.ne.s32.totalorder %s91, %s92
      %p103 = scmp.eq.s32.totalorder %s19, 0
      %p104 = por %p102, %p103
      %p105 = scmp.ne.s32.totalorder %s91, %s92
      %p106 = scmp.eq.s32.totalorder %s20, 15
      %p107 = por %p105, %p106
      %p109 = scmp.ne.s32.totalorder %s92, %s108
      %p110 = scmp.eq.s32.totalorder %s20, 0
      %p111 = por %p109, %p110
      %s112 = ssub.s32 %s22, %s29
      %p113 = scmp.eq.s32.totalorder %s112, 0
      %s115 = sadd.s32 %s114, 1
      %s116 = scalar_select %p113, %s114, %s115
      %p119 = pneg %p113
      %p120 = scmp.eq.s32.totalorder %s14, 15
      %p121 = por %p119, %p120
      %p122 = scmp.ne.s32.totalorder %s114, %s117
      %p123 = scmp.eq.s32.totalorder %s14, 0
      %p124 = por %p122, %p123
      %p125 = scmp.ne.s32.totalorder %s114, %s117
      %p126 = scmp.eq.s32.totalorder %s19, 15
      %p127 = por %p125, %p126
      %p128 = scmp.ne.s32.totalorder %s117, %s118
      %p129 = scmp.eq.s32.totalorder %s19, 0
      %p130 = por %p128, %p129
      %p131 = scmp.ne.s32.totalorder %s117, %s118
      %p132 = scmp.eq.s32.totalorder %s20, 15
      %p133 = por %p131, %p132
      %p135 = scmp.ne.s32.totalorder %s118, %s134
      %p136 = scmp.eq.s32.totalorder %s20, 0
      %p137 = por %p135, %p136
      %s139 = sadd.s32 %s138, 1
      %p142 = scmp.eq.s32.totalorder %s14, 15
      %p143 = scmp.ne.s32.totalorder %s138, %s140
      %p144 = scmp.eq.s32.totalorder %s14, 0
      %p145 = por %p143, %p144
      %p146 = scmp.ne.s32.totalorder %s138, %s140
      %p147 = scmp.eq.s32.totalorder %s19, 15
      %p148 = por %p146, %p147
      %p149 = scmp.ne.s32.totalorder %s140, %s141
      %p150 = scmp.eq.s32.totalorder %s19, 0
      %p151 = por %p149, %p150
      %p152 = scmp.ne.s32.totalorder %s140, %s141
      %p153 = scmp.eq.s32.totalorder %s20, 15
      %p154 = por %p152, %p153
      %p156 = scmp.ne.s32.totalorder %s141, %s155
      %p157 = scmp.eq.s32.totalorder %s20, 0
      %p158 = por %p156, %p157
      %s159 = ssub.s32 %s21, %s33
      %p160 = scmp.eq.s32.totalorder %s159, 0
      %s162 = sadd.s32 %s161, 1
      %s163 = scalar_select %p160, %s161, %s162
      %p166 = pneg %p160
      %p167 = scmp.eq.s32.totalorder %s14, 15
      %p168 = por %p166, %p167
      %p169 = scmp.ne.s32.totalorder %s161, %s164
      %p170 = scmp.eq.s32.totalorder %s14, 0
      %p171 = por %p169, %p170
      %p172 = scmp.ne.s32.totalorder %s161, %s164
      %p173 = scmp.eq.s32.totalorder %s19, 15
      %p174 = por %p172, %p173
      %p175 = scmp.ne.s32.totalorder %s164, %s165
      %p176 = scmp.eq.s32.totalorder %s19, 0
      %p177 = por %p175, %p176
      %p178 = scmp.ne.s32.totalorder %s164, %s165
      %p179 = scmp.eq.s32.totalorder %s20, 15
      %p180 = por %p178, %p179
      %p182 = scmp.ne.s32.totalorder %s165, %s181
      %p183 = scmp.eq.s32.totalorder %s20, 0
      %p184 = por %p182, %p183
      %p185 = scmp.le.s32.totalorder 1, %s14
      %p186 = scmp.lt.s32.totalorder %s14, 17
      %p187 = pnand %p185, %p186
      %p188 = pneg %p187
      // Predicated region
      $region9: #{tpu_custom_call.1} parent=5 // pred_check
        _
      $region10: #{tpu_custom_call.1} parent=5 // pred_check_branch
        %190 = sbr.rel (%p187) target = $region12
      $region11: #{tpu_custom_call.1} parent=5 // pred_region
        %s191 = ssub.s32 %s14, 1
        // Predicated region
        $region13: #{tpu_custom_call.1} parent=11 // pred_check
          %p192 = pneg %p151
        $region14: #{tpu_custom_call.1} parent=11 // pred_check_branch
          %194 = sbr.rel (%p192) target = $region16
        $region15: #{tpu_custom_call.1} parent=11 // pred_region
          _
        $region16: #{tpu_custom_call.1} parent=11 // pred_fallthru
          _
      $region12: #{tpu_custom_call.1} parent=5 // pred_fallthru
        _
      %p195 = scmp.lt.s32.totalorder %s14, 16
      // Predicated region
      $region17: #{tpu_custom_call.1} parent=5 // pred_check
        %p196 = pneg %p195
      $region18: #{tpu_custom_call.1} parent=5 // pred_check_branch
        %198 = sbr.rel (%p196) target = $region20
      $region19: #{tpu_custom_call.1} parent=5 // pred_region
        // Predicated region
        $region21: #{tpu_custom_call.1} parent=19 // pred_check
          %p199 = pneg %p46
        $region22: #{tpu_custom_call.1} parent=19 // pred_check_branch
          %201 = sbr.rel (%p199) target = $region24
        $region23: #{tpu_custom_call.1} parent=19 // pred_region
          %p202 = scmp.lt.s32.totalorder %s21, 1
          %s203 = scalar_select %p202, %s21, 1
          %s204 = smul.addr %s203, 4
          %s205 = scalar_lea.vmem %s0, %s204
        $region24: #{tpu_custom_call.1} parent=19 // pred_fallthru
          _
        // Predicated region
        $region25: #{tpu_custom_call.1} parent=19 // pred_check
          %p206 = pneg %p72
        $region26: #{tpu_custom_call.1} parent=19 // pred_check_branch
          %208 = sbr.rel (%p206) target = $region28
        $region27: #{tpu_custom_call.1} parent=19 // pred_region
          %p209 = scmp.lt.s32.totalorder %s22, 7
          %s210 = scalar_select %p209, %s22, 7
          %s211 = smul.addr %s210, 4
          %s212 = smul.addr %s211, 4
          %s213 = scalar_lea.vmem %s1, %s212
        $region28: #{tpu_custom_call.1} parent=19 // pred_fallthru
          _
        // Predicated region
        $region29: #{tpu_custom_call.1} parent=19 // pred_check
          %p214 = pneg %p98
        $region30: #{tpu_custom_call.1} parent=19 // pred_check_branch
          %216 = sbr.rel (%p214) target = $region32
        $region31: #{tpu_custom_call.1} parent=19 // pred_region
          %p217 = scmp.lt.s32.totalorder %s22, 7
          %s218 = scalar_select %p217, %s22, 7
          %s219 = smul.addr %s218, 2
          %s220 = scalar_lea.vmem %s2, %s219
        $region32: #{tpu_custom_call.1} parent=19 // pred_fallthru
          _
        // Predicated region
        $region33: #{tpu_custom_call.1} parent=19 // pred_check
          %p221 = pneg %p124
        $region34: #{tpu_custom_call.1} parent=19 // pred_check_branch
          %223 = sbr.rel (%p221) target = $region36
        $region35: #{tpu_custom_call.1} parent=19 // pred_region
          %p224 = scmp.lt.s32.totalorder %s22, 7
          %s225 = scalar_select %p224, %s22, 7
          %s226 = scalar_lea.vmem %s3, %s225
        $region36: #{tpu_custom_call.1} parent=19 // pred_fallthru
          _
      $region20: #{tpu_custom_call.1} parent=5 // pred_fallthru
        _
      %p227 = scmp.le.s32.totalorder 1, %s14
      %p228 = scmp.lt.s32.totalorder %s14, 17
      %p229 = pnand %p227, %p228
      %p230 = pneg %p229
      // Predicated region
      $region37: #{tpu_custom_call.1} parent=5 // pred_check
        _
      $region38: #{tpu_custom_call.1} parent=5 // pred_check_branch
        %232 = sbr.rel (%p229) target = $region40
      $region39: #{tpu_custom_call.1} parent=5 // pred_region
        %s233 = ssub.s32 %s14, 1
        %p234 = scmp.lt.s32.totalorder %s23, 1
        %s235 = scalar_select %p234, %s23, 1
        %s236 = smul.addr %s235, 4
        %s237 = scalar_lea.vmem %s0, %s236
        %p238 = pneg %p52
        %p239 = pneg %p49
        %p240 = scmp.lt.s32.totalorder %s24, 7
        %s241 = scalar_select %p240, %s24, 7
        %s242 = smul.addr %s241, 4
        %s243 = smul.addr %s242, 4
        %s244 = scalar_lea.vmem %s1, %s243
        %p245 = pneg %p78
        %p246 = pneg %p75
        %p247 = scmp.lt.s32.totalorder %s24, 7
        %s248 = scalar_select %p247, %s24, 7
        %s249 = smul.addr %s248, 2
        %s250 = scalar_lea.vmem %s2, %s249
        %p251 = pneg %p104
        %p252 = pneg %p101
        %p253 = scmp.lt.s32.totalorder %s24, 7
        %s254 = scalar_select %p253, %s24, 7
        %s255 = scalar_lea.vmem %s3, %s254
        %p256 = pneg %p130
        %p257 = pneg %p127
        %p258 = pneg %p151
        %p259 = pneg %p148
        %p260 = pneg %p177
        %p261 = pneg %p174
        %s262 = sand.u32 %s164, 1
        %s263 = scalar_lea.sflag [#allocation4], %s262
        %s264 = sand.u32 %s164, 1
        %s265 = smul.addr %s264, 8
        %s266 = scalar_lea.vmem [#allocation3], %s265
        %p267 = scmp.lt.s32.totalorder %s23, 1
        %s268 = scalar_select %p267, %s23, 1
        %s269 = smul.addr %s268, 4
        %s270 = scalar_lea.vmem %s0, %s269
        %p271 = scmp.lt.s32.totalorder %s24, 7
        %s272 = scalar_select %p271, %s24, 7
        %s273 = smul.addr %s272, 4
        %s274 = smul.addr %s273, 4
        %s275 = scalar_lea.vmem %s1, %s274
        %p276 = scmp.lt.s32.totalorder %s24, 7
        %s277 = scalar_select %p276, %s24, 7
        %s278 = smul.addr %s277, 2
        %s279 = scalar_lea.vmem %s2, %s278
        %p280 = scmp.lt.s32.totalorder %s24, 7
        %s281 = scalar_select %p280, %s24, 7
        %s282 = scalar_lea.vmem %s3, %s281
        %p284 = scmp.eq.s32.totalorder %s24, 0
        // Predicated region
        $region41: #{tpu_custom_call.1} parent=39 // pred_check
          %p285 = pneg %p284
        $region42: #{tpu_custom_call.1} parent=39 // pred_check_branch
          %287 = sbr.rel (%p285) target = $region44
        $region43: #{tpu_custom_call.1} parent=39 // pred_region
          %vm288 = vcmask 261120
          %289 = vst.msk [vmem:[#allocation2] sm:$0xff] %vm288, 0.0
        $region44: #{tpu_custom_call.1} parent=39 // pred_fallthru
          _
        %v290 = vld [vmem:[%s270] sm:$0xf]
        %v291 = vld [vmem:[%s275] sm:$0xf]
        %v292 = vld [vmem:[%s275 + $0x4] sm:$0xf]
        %v293 = vld [vmem:[%s275 + $0x8] sm:$0xf]
        %v294 = vld [vmem:[%s275 + $0xc] sm:$0xf]
        %v295 = vld [vmem:[%s279] sm:$0x3]
        %v296 = vld [vmem:[%s282] sm:$0x1]
        %v298 = vlaneseq
        %v299 = vshrl.u32 %v298, 7
        %v300 = vsub.s32 0, %v299
        %v301 = vrot.slane %v296, %v300
        %v307 = vunpack.c.l.b16 %v291
        %v308 = vunpack.c.l.b16 %v292
        %v309 = vunpack.c.l.b16 %v293
        %v310 = vunpack.c.l.b16 %v294
        %v311 = vpack.c.b16 %v308, %v307
        %v312 = vpack.c.b16 %v310, %v309
        %vm315 = vcmask 261120
        %v317 = vsel %vm315, %v290, 0
        %319 = vmatprep.subr.bf16.mxu0 0
        %320 = vmatpush1.bf16.msra.mxu0 0
        %321 = vmatprep.subr.bf16.mxu0 0
        %322 = vmatpush1.bf16.msra.mxu0 0
        %323 = vmatprep.subr.bf16.mxu0 0
        %324 = vmatpush1.bf16.msra.mxu0 0
        %325 = vmatprep.subr.bf16.mxu0 0
        %326 = vmatpush1.bf16.msra.mxu0 0
        %327 = vmatprep.subr.bf16.mxu0 0
        %328 = vmatpush1.bf16.msra.mxu0 0
        %329 = vmatprep.subr.bf16.mxu0 0
        %330 = vmatpush1.bf16.msra.mxu0 0
        %331 = vmatprep.subr.bf16.mxu0 0
        %332 = vmatpush1.bf16.msra.mxu0 %v312
        %333 = vmatprep.subr.bf16.mxu0 0
        %334 = vmatpush1.bf16.msra.mxu0 %v311
        %335 = vmatprep.subr.bf16.mxu0 0
        %336 = vmatpush2.bf16.msra.mxu0 0
        %337 = vmatprep.subr.bf16.mxu0 0
        %338 = vmatpush2.bf16.msra.mxu0 0
        %339 = vmatprep.subr.bf16.mxu0 0
        %340 = vmatpush2.bf16.msra.mxu0 0
        %341 = vmatprep.subr.bf16.mxu0 0
        %342 = vmatpush2.bf16.msra.mxu0 0
        %343 = vmatprep.subr.bf16.mxu0 0
        %344 = vmatpush2.bf16.msra.mxu0 0
        %345 = vmatprep.subr.bf16.mxu0 0
        %346 = vmatpush2.bf16.msra.mxu0 0
        %347 = vmatprep.subr.bf16.mxu0 0
        %348 = vmatpush2.bf16.msra.mxu0 0
        %349 = vmatprep.subr.bf16.mxu0 0
        %350 = vmatpush2.bf16.msra.mxu0 0
        %351 = vmatprep.mubr.bf16.mxu0 0
        %352 = vmatmul.mubr.bf16.gmra.mxu0 %v317
        %v353 = vpop.f32.mrf.mxu0
        %v354 = vadd.f32 %v301, %v353
        %v355 = vpop.f32.mrf.mxu0
        %v356 = vpop.f32.mrf.mxu0
        %v357 = vpop.f32.mrf.mxu0
        %358 = vdwg.mxu0
        %v359 = vpack.c.bf16 %v354, %v354
        %361 = vrot.lane.b32.xlu0 %v359, 124
        %v362 = vpop.permute.xlu0 %361
        %vm363 = vcmask 31744
        %v365 = vsel %vm363, %v359, 0
        %v368 = vsel %vm363, %v362, 0
        %370 = vmatprep.subr.bf16.mxu0 0
        %371 = vmatpush1.bf16.xpose.msra.mxu0 0
        %372 = vmatprep.subr.bf16.mxu0 0
        %373 = vmatpush1.bf16.xpose.msra.mxu0 0
        %374 = vmatprep.subr.bf16.mxu0 0
        %375 = vmatpush1.bf16.xpose.msra.mxu0 0
        %376 = vmatprep.subr.bf16.mxu0 0
        %377 = vmatpush1.bf16.xpose.msra.mxu0 0
        %378 = vmatprep.subr.bf16.mxu0 0
        %379 = vmatpush1.bf16.xpose.msra.mxu0 0
        %380 = vmatprep.subr.bf16.mxu0 0
        %381 = vmatpush1.bf16.xpose.msra.mxu0 0
        %382 = vmatprep.subr.bf16.mxu0 0
        %383 = vmatpush1.bf16.xpose.msra.mxu0 0
        %384 = vmatprep.subr.bf16.mxu0 0
        %385 = vmatpush1.bf16.xpose.msra.mxu0 %v368
        %386 = vmatprep.subr.bf16.mxu0 0
        %387 = vmatpush2.bf16.xpose.msra.mxu0 0
        %388 = vmatprep.subr.bf16.mxu0 0
        %389 = vmatpush2.bf16.xpose.msra.mxu0 0
        %390 = vmatprep.subr.bf16.mxu0 0
        %391 = vmatpush2.bf16.xpose.msra.mxu0 0
        %392 = vmatprep.subr.bf16.mxu0 0
        %393 = vmatpush2.bf16.xpose.msra.mxu0 0
        %394 = vmatprep.subr.bf16.mxu0 0
        %395 = vmatpush2.bf16.xpose.msra.mxu0 0
        %396 = vmatprep.subr.bf16.mxu0 0
        %397 = vmatpush2.bf16.xpose.msra.mxu0 0
        %398 = vmatprep.subr.bf16.mxu0 0
        %399 = vmatpush2.bf16.xpose.msra.mxu0 0
        %400 = vmatprep.subr.bf16.mxu0 0
        %401 = vmatpush2.bf16.xpose.msra.mxu0 0
        %402 = vmatprep.mubr.bf16.mxu0 0
        %403 = vmatmul.mubr.bf16.gmra.mxu0 %v365
        %v404 = vpop.f32.mrf.mxu0
        %v405 = vadd.f32 0.0, %v404
        %v406 = vpop.f32.mrf.mxu0
        %v407 = vpop.f32.mrf.mxu0
        %v408 = vpop.f32.mrf.mxu0
        %409 = vdwg.mxu0
        %vm410 = vcmask 64512
        %v411 = vsel %vm410, %v405, -inf
        %412 = vmax.xlane.f32.xlu0 %v411
        %v413 = vpop.xlane.xlu0 %412
        %v414 = vsub.f32 %v405, %v413
        %v415 = vmul.f32 %v414, 1.442695
        %v416 = vpow.pop %v415
        %v417 = vsel %vm410, %v416, 0.0
        %418 = vadd.xlane.f32.xlu0 %v417
        %v419 = vpop.xlane.xlu0 %418
        %v420 = vrcp.pop %v419
        %v421 = vmul.f32 %v416, %v420
        %v422 = vpack.c.bf16 %v421, %v421
        %423 = vrot.lane.b32.xlu0 %v359, 120
        %v424 = vpop.permute.xlu0 %423
        %v426 = vsel %vm410, %v422, 0
        %vm428 = vcmask 1043456
        %v430 = vsel %vm428, %v424, 0
        %432 = vmatprep.subr.bf16.mxu0 0
        %433 = vmatpush1.bf16.msra.mxu0 0
        %434 = vmatprep.subr.bf16.mxu0 0
        %435 = vmatpush1.bf16.msra.mxu0 0
        %436 = vmatprep.subr.bf16.mxu0 0
        %437 = vmatpush1.bf16.msra.mxu0 0
        %438 = vmatprep.subr.bf16.mxu0 0
        %439 = vmatpush1.bf16.msra.mxu0 0
        %440 = vmatprep.subr.bf16.mxu0 0
        %441 = vmatpush1.bf16.msra.mxu0 0
        %442 = vmatprep.subr.bf16.mxu0 0
        %443 = vmatpush1.bf16.msra.mxu0 0
        %444 = vmatprep.subr.bf16.mxu0 0
        %445 = vmatpush1.bf16.msra.mxu0 0
        %446 = vmatprep.subr.bf16.mxu0 0
        %447 = vmatpush1.bf16.msra.mxu0 %v430
        %448 = vmatprep.subr.bf16.mxu0 0
        %449 = vmatpush2.bf16.msra.mxu0 0
        %450 = vmatprep.subr.bf16.mxu0 0
        %451 = vmatpush2.bf16.msra.mxu0 0
        %452 = vmatprep.subr.bf16.mxu0 0
        %453 = vmatpush2.bf16.msra.mxu0 0
        %454 = vmatprep.subr.bf16.mxu0 0
        %455 = vmatpush2.bf16.msra.mxu0 0
        %456 = vmatprep.subr.bf16.mxu0 0
        %457 = vmatpush2.bf16.msra.mxu0 0
        %458 = vmatprep.subr.bf16.mxu0 0
        %459 = vmatpush2.bf16.msra.mxu0 0
        %460 = vmatprep.subr.bf16.mxu0 0
        %461 = vmatpush2.bf16.msra.mxu0 0
        %462 = vmatprep.subr.bf16.mxu0 0
        %463 = vmatpush2.bf16.msra.mxu0 0
        %464 = vmatprep.mubr.bf16.mxu0 0
        %465 = vmatmul.mubr.bf16.gmra.mxu0 %v426
        %v466 = vpop.f32.mrf.mxu0
        %v467 = vadd.f32 0.0, %v466
        %v468 = vpop.f32.mrf.mxu0
        %v469 = vpop.f32.mrf.mxu0
        %v470 = vpop.f32.mrf.mxu0
        %471 = vdwg.mxu0
        %v472 = vld [vmem:[#allocation2] sm:$0xff]
        %v473 = vpack.c.bf16 %v467, %v467
        %v475 = vsel %vm363, %v473, 0
        %vm477 = vcmask 1041408
        %v479 = vsel %vm477, %v295, 0
        %481 = vmatprep.subr.bf16.mxu0 0
        %482 = vmatpush1.bf16.msra.mxu0 0
        %483 = vmatprep.subr.bf16.mxu0 0
        %484 = vmatpush1.bf16.msra.mxu0 0
        %485 = vmatprep.subr.bf16.mxu0 0
        %486 = vmatpush1.bf16.msra.mxu0 0
        %487 = vmatprep.subr.bf16.mxu0 0
        %488 = vmatpush1.bf16.msra.mxu0 0
        %489 = vmatprep.subr.bf16.mxu0 0
        %490 = vmatpush1.bf16.msra.mxu0 0
        %491 = vmatprep.subr.bf16.mxu0 0
        %492 = vmatpush1.bf16.msra.mxu0 0
        %493 = vmatprep.subr.bf16.mxu0 0
        %494 = vmatpush1.bf16.msra.mxu0 0
        %495 = vmatprep.subr.bf16.mxu0 0
        %496 = vmatpush1.bf16.msra.mxu0 %v479
        %497 = vmatprep.subr.bf16.mxu0 0
        %498 = vmatpush2.bf16.msra.mxu0 0
        %499 = vmatprep.subr.bf16.mxu0 0
        %500 = vmatpush2.bf16.msra.mxu0 0
        %501 = vmatprep.subr.bf16.mxu0 0
        %502 = vmatpush2.bf16.msra.mxu0 0
        %503 = vmatprep.subr.bf16.mxu0 0
        %504 = vmatpush2.bf16.msra.mxu0 0
        %505 = vmatprep.subr.bf16.mxu0 0
        %506 = vmatpush2.bf16.msra.mxu0 0
        %507 = vmatprep.subr.bf16.mxu0 0
        %508 = vmatpush2.bf16.msra.mxu0 0
        %509 = vmatprep.subr.bf16.mxu0 0
        %510 = vmatpush2.bf16.msra.mxu0 0
        %511 = vmatprep.subr.bf16.mxu0 0
        %512 = vmatpush2.bf16.msra.mxu0 0
        %513 = vmatprep.mubr.bf16.mxu0 0
        %514 = vmatmul.mubr.bf16.gmra.mxu0 %v475
        %v515 = vpop.f32.mrf.mxu0
        %v516 = vadd.f32 0.0, %v515
        %v517 = vpop.f32.mrf.mxu0
        %v518 = vpop.f32.mrf.mxu0
        %v519 = vpop.f32.mrf.mxu0
        %520 = vdwg.mxu0
        %v521 = vadd.f32 %v472, %v516
        %522 = vst.msk [vmem:[#allocation2] sm:$0xff] %vm315, %v521
        %p523 = scmp.eq.s32.totalorder %s24, 7
        // Predicated region
        $region45: #{tpu_custom_call.1} parent=39 // pred_check
          %p524 = pneg %p523
        $region46: #{tpu_custom_call.1} parent=39 // pred_check_branch
          %526 = sbr.rel (%p524) target = $region48
        $region47: #{tpu_custom_call.1} parent=39 // pred_region
          %v527 = vld [vmem:[#allocation2] sm:$0xff]
          %v528 = vld [vmem:[%s4] sm:$0x1]
          %v530 = vlaneseq
          %v531 = vshrl.u32 %v530, 7
          %v532 = vsub.s32 0, %v531
          %v533 = vrot.slane %v528, %v532
          %v535 = vadd.f32 %v527, %v533
          %536 = vst.msk [vmem:[%s266] sm:$0xff] %vm315, %v535
        $region48: #{tpu_custom_call.1} parent=39 // pred_fallthru
          _
        %s537 = sand.u32 %s164, 1
        %s538 = scalar_lea.sflag [#allocation4], %s537
        %s539 = sand.u32 %s164, 1
        %s540 = smul.addr %s539, 8
        %s541 = scalar_lea.vmem [#allocation3], %s540
        // Predicated region
        $region49: #{tpu_custom_call.1} parent=39 // pred_check
          %p542 = pneg %p174
        $region50: #{tpu_custom_call.1} parent=39 // pred_check_branch
          %544 = sbr.rel (%p542) target = $region52
        $region51: #{tpu_custom_call.1} parent=39 // pred_region
          %s546 = ssub.s32 128, 128
          %547 = vsyncadd %s538, %s546
          %s548 = smul.addr %s23, 128
          %s549 = scalar_lea.hbm %s5, %s548
          %s551 = sshll.u32 %s541, 4
          %s552 = int_to_ptr.vmem [resolvable:$true] %s551
          %554 = dma.vmem_to_hbm [thread:$0]  %s552, 128, %s549, %s538
        $region52: #{tpu_custom_call.1} parent=39 // pred_fallthru
          _
      $region40: #{tpu_custom_call.1} parent=5 // pred_fallthru
        _
      %p555 = scmp.le.s32.totalorder 2, %s14
      // Predicated region
      $region53: #{tpu_custom_call.1} parent=5 // pred_check
        %p556 = pneg %p555
      $region54: #{tpu_custom_call.1} parent=5 // pred_check_branch
        %558 = sbr.rel (%p556) target = $region56
      $region55: #{tpu_custom_call.1} parent=5 // pred_region
        %s559 = ssub.s32 %s14, 2
        // Predicated region
        $region57: #{tpu_custom_call.1} parent=55 // pred_check
          %p560 = pneg %p180
        $region58: #{tpu_custom_call.1} parent=55 // pred_check_branch
          %562 = sbr.rel (%p560) target = $region60
        $region59: #{tpu_custom_call.1} parent=55 // pred_region
          %s563 = sand.u32 %s165, 1
          %s564 = scalar_lea.sflag [#allocation4], %s563
          %s565 = sand.u32 %s165, 1
          %s566 = smul.addr %s565, 8
          %s567 = scalar_lea.vmem [#allocation3], %s566
          %568 = dma.done %s564, 128
        $region60: #{tpu_custom_call.1} parent=55 // pred_fallthru
          _
      $region56: #{tpu_custom_call.1} parent=5 // pred_fallthru
        _
    $region6: #{tpu_custom_call.1} parent=1 // loop_footer
      %s18 = sadd.s32 1, %s14
    $region7: #{tpu_custom_call.1} parent=1 // loop_footer_branch
      %13 = sbr.rel target = $region3
    $region8: #{tpu_custom_call.1} parent=1 // loop_exit
      _
    %569 = vsyncpa [#allocation4], 1
    %s570 = scalar_lea.sflag [#allocation4], 1
    %571 = vsyncpa %s570, 1

</llo_original>
